<compile_context>
chip_gen: v7x
topology: tpu7x:2x2x1
jax: 0.10.0
libtpu: 0.0.40
codegen_flags: <defaults>
</compile_context>

<pallas_src>
import jax
import jax.numpy as jnp
import numpy as np
from jax.experimental import pallas as pl
from jax.experimental.pallas import tpu as pltpu


def _round_up(x: int, m: int) -> int:
    return (x + m - 1) // m * m


def _resize_matrix(in_size: int, out_size: int) -> np.ndarray:
    """(out_size, in_size) antialiased bilinear (triangle-filter) resize matrix.

    Matches jax.image.resize(method='linear', antialias=True) and the
    PIL/torchvision bilinear Resize convention: half-pixel centers, filter
    support widened by the downscale factor, rows normalized to sum to 1.
    """
    scale = out_size / in_size
    inv_scale = 1.0 / scale
    kernel_scale = max(inv_scale, 1.0)  # antialias: widen support when downscaling
    sample_f = (np.arange(out_size, dtype=np.float64) + 0.5) * inv_scale - 0.5
    x = np.abs(sample_f[None, :] - np.arange(in_size, dtype=np.float64)[:, None])
    x = x / kernel_scale
    w = np.maximum(0.0, 1.0 - x)                       # triangle kernel, (in, out)
    total = np.sum(w, axis=0, keepdims=True)
    w = np.where(np.abs(total) > 1e-6,
                 w / np.where(total != 0.0, total, 1.0), 0.0)
    valid = (sample_f >= -0.5) & (sample_f <= in_size - 0.5)
    w = np.where(valid[None, :], w, 0.0)
    return np.asarray(w.T, dtype=np.float32)           # (out, in)


def _preprocess_kernel(bias_ref, img_ref, rh_ref, rwt_hbm_ref, out_ref,
                       acc_ref, rwt_vmem_ref, sem_ref):
    # bias: (C,) f32 SMEM                      img: (TH, W*C) uint8 VMEM tile
    # rh:   (out_Hp, TH) bf16 VMEM tile        rwt_hbm: (W*C, C*out_Wp) bf16 HBM
    # out:  (C, out_Hp, out_Wp) f32 VMEM       acc: (out_Hp, W*C) f32 scratch
    # rwt_vmem: (W*C, C*out_Wp) bf16 scratch   sem: (1,) DMA semaphore
    C, out_hp, out_wp = out_ref.shape
    step = pl.program_id(0)
    nsteps = pl.num_programs(0)

    @pl.when(step == 0)
    def _init():
        acc_ref[...] = jnp.zeros_like(acc_ref)
        # Kick off the single DMA of the column-resize matrix; it is only
        # needed at the last step, so it overlaps the whole stage-1 stream.
        pltpu.make_async_copy(rwt_hbm_ref, rwt_vmem_ref, sem_ref.at[0]).start()

    # Stage 1 (streamed): H-resize of this source-row chunk, all channels at
    # once on the interleaved (TH, W*C) view.  Per-tile uint8 -> bf16 cast on
    # the VPU; MXU runs bf16 natively with an f32 accumulator.
    img_bf16 = img_ref[...].astype(jnp.float32).astype(jnp.bfloat16)
    acc_ref[...] += jnp.dot(rh_ref[...], img_bf16,
                            preferred_element_type=jnp.float32)

    @pl.when(step == nsteps - 1)
    def _finalize():
        pltpu.make_async_copy(rwt_hbm_ref, rwt_vmem_ref, sem_ref.at[0]).wait()
        # Stage 2: W-resize for all channels in one matmul.  The per-channel
        # ToTensor(/255) * 1/std scale is pre-folded into rwt's columns, so
        # only the bias add remains at the (lane-dense) per-channel store.
        res = jnp.dot(acc_ref[...].astype(jnp.bfloat16), rwt_vmem_ref[...],
                      preferred_element_type=jnp.float32)
        for c in range(C):  # static unroll, C is small
            out_ref[c] = res[:, c * out_wp:(c + 1) * out_wp] + bias_ref[c]


def preprocess(img_hwc_u8: jax.Array, resize_size: int, mean, std, *,
               row_tile_bytes: int = 2 << 20) -> jax.Array:
    """Mimics tt.Compose([Resize((s,s)), ToTensor(), Normalize(mean, std)]).

    Input : (H, W, C) uint8 (PIL-style image)
    Output: (C, resize_size, resize_size) float32
    """
    H, W, C = img_hwc_u8.shape
    assert len(mean) == C and len(std) == C
    WC = W * C
    # Native HWC buffer viewed as (H, W*C): free reshape, no transpose pass.
    img2d = img_hwc_u8.reshape(H, WC)

    out_h = out_w = int(resize_size)
    out_hp = _round_up(out_h, 8)                 # sublane-aligned intermediate rows
    out_wp = _round_up(max(out_w, 128), 128)     # lane-dense output width

    # Source-row tiling: stream the image through VMEM in row chunks.
    if H * WC <= row_tile_bytes:
        th, nsteps = H, 1
    else:
        th = max(256, (row_tile_bytes // WC) // 256 * 256)   # mult of 256:
        if th >= H:                                          #  u8 sublane (32) and
            th, nsteps = H, 1                                #  bf16 lane (128) safe
        else:
            nsteps = -(-H // th)
    hp = th * nsteps

    mean_np = np.asarray(mean, np.float64)
    std_np = np.asarray(std, np.float64)

    # Row-resize matrix, zero-padded to (out_hp, hp).  Padding columns (>= H)
    # are zero so garbage rows of a partial last image tile contribute nothing.
    rh_np = np.zeros((out_hp, hp), np.float32)
    rh_np[:out_h, :H] = _resize_matrix(H, out_h)
    rh = jnp.asarray(rh_np, jnp.bfloat16)

    # Channel-interleaved column-resize matrix with the ToTensor+Normalize
    # scale folded in:  rwt[w*C + c, c*out_wp + ow] = Rw[ow, w] / (255 * std_c)
    rw_np = _resize_matrix(W, out_w)                           # (out_w, W)
    rwt_np = np.zeros((WC, C * out_wp), np.float32)
    for c in range(C):
        rwt_np[c::C, c * out_wp:c * out_wp + out_w] = rw_np.T / (255.0 * std_np[c])
    rwt = jnp.asarray(rwt_np, jnp.bfloat16)

    bias = jnp.asarray(-mean_np / std_np, jnp.float32)         # (C,)

    flops = 2 * out_hp * hp * WC + 2 * out_hp * WC * (C * out_wp)
    bytes_accessed = int(H * WC + 2 * out_hp * hp + 2 * WC * C * out_wp
                         + 4 * C * out_hp * out_wp + 4 * C)

    # Generation-aware VMEM budget (v7x has 64 MiB vs 128 MiB on v5e/v6e).
    vmem_need = int(2 * th * WC                  # uint8 image double buffer
                    + 6 * th * WC                # per-tile cast temps
                    + 4 * out_hp * th            # rh double buffer (bf16)
                    + 8 * out_hp * WC            # f32 acc + stage-1 dot result
                    + 2 * out_hp * WC            # acc bf16 cast (stage 2)
                    + 2 * WC * C * out_wp        # resident rwt copy (bf16)
                    + 12 * C * out_hp * out_wp   # output buffers + stage-2 result
                    + (2 << 20))                 # headroom
    try:
        vmem_cap = int(pltpu.get_tpu_info().vmem_capacity_bytes)
    except Exception:
        vmem_cap = 64 << 20
    vmem_limit = int(min(max(vmem_need, 16 << 20), int(vmem_cap * 0.75)))

    out = pl.pallas_call(
        _preprocess_kernel,
        out_shape=jax.ShapeDtypeStruct((C, out_hp, out_wp), jnp.float32),
        grid=(nsteps,),
        in_specs=[
            pl.BlockSpec(memory_space=pltpu.MemorySpace.SMEM),    # bias (C,)
            pl.BlockSpec((th, WC), lambda i: (i, 0)),             # image row chunk
            pl.BlockSpec((out_hp, th), lambda i: (0, i)),         # rh column chunk
            pl.BlockSpec(memory_space=pl.ANY),                    # rwt stays in HBM
        ],
        out_specs=pl.BlockSpec((C, out_hp, out_wp), lambda i: (0, 0, 0)),
        scratch_shapes=[
            pltpu.VMEM((out_hp, WC), jnp.float32),                # acc
            pltpu.VMEM((WC, C * out_wp), jnp.bfloat16),           # resident rwt copy
            pltpu.SemaphoreType.DMA((1,)),
        ],
        compiler_params=pltpu.CompilerParams(
            dimension_semantics=("arbitrary",),     # reduction over row chunks
            vmem_limit_bytes=vmem_limit),
        cost_estimate=pl.CostEstimate(flops=flops, transcendentals=0,
                                      bytes_accessed=bytes_accessed),
    )(bias, img2d, rh, rwt)

    return out[:, :out_h, :out_w]


def _reference(img_hwc_u8, resize_size, mean, std):
    """Same pipeline in pure JAX f32 (antialiased bilinear, then normalize)."""
    C = img_hwc_u8.shape[-1]
    img_f = jnp.transpose(img_hwc_u8, (2, 0, 1)).astype(jnp.float32) / 255.0
    ref = jax.image.resize(img_f, (C, resize_size, resize_size),
                           method="linear", antialias=True)
    m = jnp.asarray(mean, jnp.float32)[:, None, None]
    s = jnp.asarray(std, jnp.float32)[:, None, None]
    return (ref - m) / s


if __name__ == "__main__":
    mean = [0.485, 0.456, 0.406]
    std = [0.229, 0.224, 0.225]
    key1, key2 = jax.random.split(jax.random.PRNGKey(0))

    # Test 1: small image, single row-chunk path.
    img1 = jax.random.randint(key1, (16, 16, 3), 0, 256,
                              dtype=jnp.int32).astype(jnp.uint8)
    out1 = jax.block_until_ready(preprocess(img1, 8, mean, std))
    ref1 = _reference(img1, 8, mean, std)
    assert out1.shape == (3, 8, 8) and out1.dtype == jnp.float32
    err1 = float(jnp.max(jnp.abs(out1 - ref1)))
    # bf16 MXU operands give ~1e-2-level absolute error after normalize.
    assert err1 < 5e-2, f"test1 max abs err {err1}"

    # Test 2: taller image with a small row-tile budget to exercise the
    # multi-chunk streaming path (pipelined DMA + accumulation + partial tile).
    img2 = jax.random.randint(key2, (640, 224, 3), 0, 256,
                              dtype=jnp.int32).astype(jnp.uint8)
    out2 = jax.block_until_ready(
        preprocess(img2, 64, mean, std, row_tile_bytes=128 * 1024))
    ref2 = _reference(img2, 64, mean, std)
    assert out2.shape == (3, 64, 64) and out2.dtype == jnp.float32
    err2 = float(jnp.max(jnp.abs(out2 - ref2)))
    assert err2 < 5e-2, f"test2 max abs err {err2}"

    print("KERNEL_OK")
</pallas_src>

<mosaic_0001>
module attributes {stable_mosaic.version = 11 : i64} {
  func.func @_preprocess_kernel(%arg0: i32, %arg1: memref<3xf32, #tpu.memory_space<smem>>, %arg2: memref<16x48xi8, #tpu.memory_space<vmem>>, %arg3: memref<8x16xbf16, #tpu.memory_space<vmem>>, %arg4: memref<48x384xbf16, #tpu.memory_space<any>>, %arg5: memref<3x8x128xf32, #tpu.memory_space<vmem>>, %arg6: memref<8x48xf32, #tpu.memory_space<vmem>>, %arg7: memref<48x384xbf16, #tpu.memory_space<vmem>>, %arg8: memref<1x!tpu.dma_semaphore, #tpu.memory_space<semaphore_mem>>) attributes {dimension_semantics = [#tpu.dimension_semantics<arbitrary>], iteration_bounds = array<i64: 1>, scalar_prefetch = 0 : i64, scratch_operands = 3 : i64, tpu.core_type = #tpu.core_type<tc>, window_params = [{transform_indices = @transform_0, window_bounds = array<i64: 3>}, {transform_indices = @transform_1, window_bounds = array<i64: 16, 48>}, {transform_indices = @transform_2, window_bounds = array<i64: 8, 16>}, {}, {pipeline_mode = #tpu.pipeline_mode<synchronous>, transform_indices = @transform_4, window_bounds = array<i64: 3, 8, 128>}]} {
    %c0_i32 = arith.constant 0 : i32
    %0 = arith.cmpi eq, %arg0, %c0_i32 : i32
    %1 = arith.extui %0 : i1 to i32
    %c0_i32_0 = arith.constant 0 : i32
    %2 = arith.cmpi ne, %1, %c0_i32_0 : i32
    scf.if %2 {
      %cst_10 = arith.constant 0.000000e+00 : f32
      %14 = vector.broadcast %cst_10 : f32 to vector<8x48xf32>
      %c0_11 = arith.constant 0 : index
      %c0_12 = arith.constant 0 : index
      %15 = vector.load %arg6[%c0_11, %c0_12] : memref<8x48xf32, #tpu.memory_space<vmem>>, vector<8x48xf32>
      tpu.vector_store %arg6[%c0_11, %c0_12], %14 {strides = array<i32>} : memref<8x48xf32, #tpu.memory_space<vmem>>, vector<8x48xf32>,
      %c0_i32_13 = arith.constant 0 : i32
      %16 = tpu.memref_slice %arg8[%c0_i32_13] : memref<1x!tpu.dma_semaphore, #tpu.memory_space<semaphore_mem>> -> memref<1x!tpu.dma_semaphore, #tpu.memory_space<semaphore_mem>>
      %17 = tpu.memref_squeeze %16 : memref<1x!tpu.dma_semaphore, #tpu.memory_space<semaphore_mem>> -> memref<!tpu.dma_semaphore, #tpu.memory_space<semaphore_mem>>
      tpu.enqueue_dma source(%arg4 : memref<48x384xbf16, #tpu.memory_space<any>>) target(%arg7 : memref<48x384xbf16, #tpu.memory_space<vmem>>) target_semaphore(%17 : memref<!tpu.dma_semaphore, #tpu.memory_space<semaphore_mem>>)
    } else {
    }
    %c0 = arith.constant 0 : index
    %c0_1 = arith.constant 0 : index
    %3 = vector.load %arg2[%c0, %c0_1] : memref<16x48xi8, #tpu.memory_space<vmem>>, vector<16x48xi8>
    %4 = arith.uitofp %3 : vector<16x48xi8> to vector<16x48xf32>
    %5 = arith.truncf %4 : vector<16x48xf32> to vector<16x48xbf16>
    %c0_2 = arith.constant 0 : index
    %c0_3 = arith.constant 0 : index
    %6 = vector.load %arg6[%c0_2, %c0_3] : memref<8x48xf32, #tpu.memory_space<vmem>>, vector<8x48xf32>
    %c0_4 = arith.constant 0 : index
    %c0_5 = arith.constant 0 : index
    %7 = vector.load %arg3[%c0_4, %c0_5] : memref<8x16xbf16, #tpu.memory_space<vmem>>, vector<8x16xbf16>
    %cst = arith.constant dense<0.000000e+00> : vector<8x48xf32>
    %8 = tpu.matmul %7, %5, %cst {dimension_numbers = #tpu.dot_dimension_numbers<[1], [0], [0], [1], [0, 0, 1, 1], [], []>} : vector<8x16xbf16>, vector<16x48xbf16>, vector<8x48xf32> -> vector<8x48xf32>
    %9 = arith.addf %6, %8 : vector<8x48xf32>
    %c0_6 = arith.constant 0 : index
    %c0_7 = arith.constant 0 : index
    %10 = vector.load %arg6[%c0_6, %c0_7] : memref<8x48xf32, #tpu.memory_space<vmem>>, vector<8x48xf32>
    tpu.vector_store %arg6[%c0_6, %c0_7], %9 {strides = array<i32>} : memref<8x48xf32, #tpu.memory_space<vmem>>, vector<8x48xf32>,
    %c0_i32_8 = arith.constant 0 : i32
    %11 = arith.cmpi eq, %arg0, %c0_i32_8 : i32
    %12 = arith.extui %11 : i1 to i32
    %c0_i32_9 = arith.constant 0 : i32
    %13 = arith.cmpi ne, %12, %c0_i32_9 : i32
    scf.if %13 {
      %c0_i32_10 = arith.constant 0 : i32
      %14 = tpu.memref_slice %arg8[%c0_i32_10] : memref<1x!tpu.dma_semaphore, #tpu.memory_space<semaphore_mem>> -> memref<1x!tpu.dma_semaphore, #tpu.memory_space<semaphore_mem>>
      %15 = tpu.memref_squeeze %14 : memref<1x!tpu.dma_semaphore, #tpu.memory_space<semaphore_mem>> -> memref<!tpu.dma_semaphore, #tpu.memory_space<semaphore_mem>>
      tpu.wait_dma2 semaphore(%15 : memref<!tpu.dma_semaphore, #tpu.memory_space<semaphore_mem>>) src(%arg4 : memref<48x384xbf16, #tpu.memory_space<any>>) dst(%arg7 : memref<48x384xbf16, #tpu.memory_space<vmem>>)
      %c0_11 = arith.constant 0 : index
      %c0_12 = arith.constant 0 : index
      %16 = vector.load %arg6[%c0_11, %c0_12] : memref<8x48xf32, #tpu.memory_space<vmem>>, vector<8x48xf32>
      %17 = arith.truncf %16 : vector<8x48xf32> to vector<8x48xbf16>
      %c0_13 = arith.constant 0 : index
      %c0_14 = arith.constant 0 : index
      %18 = vector.load %arg7[%c0_13, %c0_14] : memref<48x384xbf16, #tpu.memory_space<vmem>>, vector<48x384xbf16>
      %cst_15 = arith.constant dense<0.000000e+00> : vector<8x384xf32>
      %19 = tpu.matmul %17, %18, %cst_15 {dimension_numbers = #tpu.dot_dimension_numbers<[1], [0], [0], [1], [0, 0, 1, 1], [], []>} : vector<8x48xbf16>, vector<48x384xbf16>, vector<8x384xf32> -> vector<8x384xf32>
      %20 = vector.extract_strided_slice %19 {offsets = [0, 0], sizes = [8, 128], strides = [1, 1]} : vector<8x384xf32> to vector<8x128xf32>
      %c0_16 = arith.constant 0 : index
      %21 = memref.load %arg1[%c0_16] : memref<3xf32, #tpu.memory_space<smem>>
      %22 = vector.broadcast %21 : f32 to vector<8x128xf32>
      %23 = arith.addf %20, %22 : vector<8x128xf32>
      %c0_17 = arith.constant 0 : index
      %c0_18 = arith.constant 0 : index
      %c0_19 = arith.constant 0 : index
      %24 = vector.load %arg5[%c0_17, %c0_18, %c0_19] : memref<3x8x128xf32, #tpu.memory_space<vmem>>, vector<1x8x128xf32>
      %25 = vector.shape_cast %24 : vector<1x8x128xf32> to vector<8x128xf32>
      %26 = vector.shape_cast %23 : vector<8x128xf32> to vector<1x8x128xf32>
      tpu.vector_store %arg5[%c0_17, %c0_18, %c0_19], %26 {strides = array<i32>} : memref<3x8x128xf32, #tpu.memory_space<vmem>>, vector<1x8x128xf32>,
      %27 = vector.extract_strided_slice %19 {offsets = [0, 128], sizes = [8, 128], strides = [1, 1]} : vector<8x384xf32> to vector<8x128xf32>
      %c1 = arith.constant 1 : index
      %28 = memref.load %arg1[%c1] : memref<3xf32, #tpu.memory_space<smem>>
      %29 = vector.broadcast %28 : f32 to vector<8x128xf32>
      %30 = arith.addf %27, %29 : vector<8x128xf32>
      %c1_20 = arith.constant 1 : index
      %c0_21 = arith.constant 0 : index
      %c0_22 = arith.constant 0 : index
      %31 = vector.load %arg5[%c1_20, %c0_21, %c0_22] : memref<3x8x128xf32, #tpu.memory_space<vmem>>, vector<1x8x128xf32>
      %32 = vector.shape_cast %31 : vector<1x8x128xf32> to vector<8x128xf32>
      %33 = vector.shape_cast %30 : vector<8x128xf32> to vector<1x8x128xf32>
      tpu.vector_store %arg5[%c1_20, %c0_21, %c0_22], %33 {strides = array<i32>} : memref<3x8x128xf32, #tpu.memory_space<vmem>>, vector<1x8x128xf32>,
      %34 = vector.extract_strided_slice %19 {offsets = [0, 256], sizes = [8, 128], strides = [1, 1]} : vector<8x384xf32> to vector<8x128xf32>
      %c2 = arith.constant 2 : index
      %35 = memref.load %arg1[%c2] : memref<3xf32, #tpu.memory_space<smem>>
      %36 = vector.broadcast %35 : f32 to vector<8x128xf32>
      %37 = arith.addf %34, %36 : vector<8x128xf32>
      %c2_23 = arith.constant 2 : index
      %c0_24 = arith.constant 0 : index
      %c0_25 = arith.constant 0 : index
      %38 = vector.load %arg5[%c2_23, %c0_24, %c0_25] : memref<3x8x128xf32, #tpu.memory_space<vmem>>, vector<1x8x128xf32>
      %39 = vector.shape_cast %38 : vector<1x8x128xf32> to vector<8x128xf32>
      %40 = vector.shape_cast %37 : vector<8x128xf32> to vector<1x8x128xf32>
      tpu.vector_store %arg5[%c2_23, %c0_24, %c0_25], %40 {strides = array<i32>} : memref<3x8x128xf32, #tpu.memory_space<vmem>>, vector<1x8x128xf32>,
    } else {
    }
    return
  }
  func.func @transform_0(%arg0: i32) -> i32 {
    %c0_i32 = arith.constant 0 : i32
    %c0_i32_0 = arith.constant 0 : i32
    return %c0_i32 : i32
  }
  func.func @transform_1(%arg0: i32) -> (i32, i32) {
    %c0_i32 = arith.constant 0 : i32
    %c0_i32_0 = arith.constant 0 : i32
    return %arg0, %c0_i32 : i32, i32
  }
  func.func @transform_2(%arg0: i32) -> (i32, i32) {
    %c0_i32 = arith.constant 0 : i32
    %c0_i32_0 = arith.constant 0 : i32
    return %c0_i32, %arg0 : i32, i32
  }
  func.func @transform_4(%arg0: i32) -> (i32, i32, i32) {
    %c0_i32 = arith.constant 0 : i32
    %c0_i32_0 = arith.constant 0 : i32
    %c0_i32_1 = arith.constant 0 : i32
    %c0_i32_2 = arith.constant 0 : i32
    return %c0_i32, %c0_i32_0, %c0_i32_1 : i32, i32, i32
  }
}

</mosaic_0001>

<llo_original>
// kernel: tpu_custom_call.1
$region0: #{tpu_custom_call.1}
  #allocation0 [shape = 'u32[]', space=smem, size = 0x4, offset = 0x4, fixed_abs, tag = 'smem constant byte address 0x4 - core index']
  #allocation1 [shape = 'u32[144,128]{1,0:T(1,128)}', space=vmem, size = 0x12000, scoped, tag = 'internal scratch']
  #allocation2 [shape = 'f32[8,48]{1,0:T(8,128)}', space=vmem, size = 0x1000, scoped, tag = 'scratch operand']
  #allocation3 [shape = 'bf16[48,384]{1,0:T(16,128)(2,1)}', space=vmem, size = 0x9000, scoped, tag = 'scratch operand']
  #allocation4 [shape = 's32[1]{0}', space=sflag, size = 0x4, scoped, tag = 'scratch operand']
  #allocation11 [shape = 's32[]', space=sflag, size = 0x4, offset = 0, fixed_abs, tag = 'sflag constant byte address 0x0 - dummy sync flag']
  %s0 = inlined_call_operand.hbm [shape: f32[3], index: 0, kind: input, shape index: {}]
  %s1 = inlined_call_operand.hbm [shape: u8[16,48], index: 1, kind: input, shape index: {}]
  %s2 = inlined_call_operand.vmem [shape: bf16[8,16], index: 2, kind: input, shape index: {}]
  %s3 = inlined_call_operand.hbm [shape: bf16[48,384], index: 3, kind: input, shape index: {}]
  %s4 = inlined_call_operand.hbm [shape: f32[3,8,128], index: 4, kind: output, shape index: {}]
  %s5 = sld [smem:[#allocation0]]
  $region38: #{tpu_custom_call.1} parent=0
    _
  %s7 = ssub.s32 1, %s5
  %s8 = scalar_select 0, %s7, %s5
  $region1: #{tpu_custom_call.1} parent=0
    #allocation5 [shape = 'u8[512]{0}', space=smem, size = 0x200, scoped, tag = 'input window, operand 0, single buffered']
    #allocation6 [shape = 's32[1]{0}', space=sflag, size = 0x4, scoped, tag = 'scoped memory for tpu_custom_call.1']
    #allocation7 [shape = 's32[1]{0}', space=sflag, size = 0x4, scoped, tag = 'scoped memory for tpu_custom_call.1']
    #allocation8 [shape = 's32[1]{0}', space=sflag, size = 0x4, scoped, tag = 'scoped memory for tpu_custom_call.1']
    #allocation9 [shape = 'u8[2048]{0}', space=vmem, size = 0x800, scoped, tag = 'input window, operand 1, single buffered']
    #allocation10 [shape = 'u8[12288]{0}', space=vmem, size = 0x3000, scoped, tag = 'output window, operand 0, single buffered']
    %9 = vsyncpa [#allocation8], 0
    %10 = vsyncpa [#allocation6], 0
    %11 = vsyncpa [#allocation7], 0
    // Predicated region
    $region2: #{tpu_custom_call.1} parent=1 // pred_check
      _
    $region3: #{tpu_custom_call.1} parent=1 // pred_check_branch
      %13 = sbr.rel (0) target = $region5
    $region4: #{tpu_custom_call.1} parent=1 // pred_region
      %s15 = ssub.s32 16, 16
      %16 = vsyncadd [#allocation8], %s15
      %19 = dma.hbm_to_smem %s0, 16, [#allocation5], [#allocation8]
    $region5: #{tpu_custom_call.1} parent=1 // pred_fallthru
      _
    // Predicated region
    $region6: #{tpu_custom_call.1} parent=1 // pred_check
      _
    $region7: #{tpu_custom_call.1} parent=1 // pred_check_branch
      %21 = sbr.rel (0) target = $region9
    $region8: #{tpu_custom_call.1} parent=1 // pred_region
      %s23 = ssub.s32 64, 64
      %24 = vsyncadd [#allocation6], %s23
      %s25 = sshll.u32 [#allocation9], 4
      %s26 = int_to_ptr.vmem [resolvable:$true] %s25
      %31 = dma.hbm_to_vmem [thread:$0]  %s1, 64, %s26, [#allocation6], 32, 32, 2
    $region9: #{tpu_custom_call.1} parent=1 // pred_fallthru
      _
    // Predicated region
    $region10: #{tpu_custom_call.1} parent=1 // pred_check
      _
    $region11: #{tpu_custom_call.1} parent=1 // pred_check_branch
      %33 = sbr.rel (0) target = $region13
    $region12: #{tpu_custom_call.1} parent=1 // pred_region
      _
    $region13: #{tpu_custom_call.1} parent=1 // pred_fallthru
      _
    // Predicated region
    $region14: #{tpu_custom_call.1} parent=1 // pred_check
      _
    $region15: #{tpu_custom_call.1} parent=1 // pred_check_branch
      %35 = sbr.rel (0) target = $region17
    $region16: #{tpu_custom_call.1} parent=1 // pred_region
      %36 = dma.done [#allocation8], 16
    $region17: #{tpu_custom_call.1} parent=1 // pred_fallthru
      _
    // Predicated region
    $region18: #{tpu_custom_call.1} parent=1 // pred_check
      _
    $region19: #{tpu_custom_call.1} parent=1 // pred_check_branch
      %38 = sbr.rel (0) target = $region21
    $region20: #{tpu_custom_call.1} parent=1 // pred_region
      %39 = dma.done [#allocation6], 64
    $region21: #{tpu_custom_call.1} parent=1 // pred_fallthru
      _
    %40 = sfence
    %p42 = scmp.eq.s32.totalorder 0, 0
    // Predicated region
    $region22: #{tpu_custom_call.1} parent=1 // pred_check
      %p43 = pneg %p42
    $region23: #{tpu_custom_call.1} parent=1 // pred_check_branch
      %45 = sbr.rel (%p43) target = $region25
    $region24: #{tpu_custom_call.1} parent=1 // pred_region
      #allocation12 [shape = 'u32[9]{0}', space=smem, size = 0x24, scoped, tag = 'DMA stride descriptor']
      %vm46 = vcmask 392192
      %47 = vst.msk [vmem:[#allocation2] sm:$0xff] %vm46, 0.0
      %s49 = sshll.u32 1, 14
      %s50 = sxor.u32 4294967295, %s49
      %s52 = sld [smem:[#allocation0]]
      %s53 = sadd.s32 2, %s52
      %s55 = sshll.u32 7, 26
      %s56 = sxor.u32 4294967295, %s55
      %s57 = sand.u32 0, %s56
      %s58 = sshll.u32 %s53, 26
      %s59 = sor.u32 %s57, %s58
      %s60 = sshll.u32 [#allocation3], 4
      %s61 = int_to_ptr.vmem [resolvable:$true] %s60
      %64 = sst [smem:[#allocation12]] 384
      %s65 = scalar_lea.smem [#allocation12], 1
      %66 = sst [smem:[%s65]] 384
      %s67 = scalar_lea.smem [#allocation12], 2
      %68 = sst [smem:[%s67]] 3
      %s69 = scalar_lea.smem [#allocation12], 3
      %70 = sst [smem:[%s69]] 64
      %s71 = scalar_lea.smem [#allocation12], 4
      %72 = sst [smem:[%s71]] 128
      %s73 = scalar_lea.smem [#allocation12], 5
      %74 = sst [smem:[%s73]] 2
      %s75 = scalar_lea.smem [#allocation12], 6
      %76 = sst [smem:[%s75]] 192
      %s77 = scalar_lea.smem [#allocation12], 7
      %78 = sst [smem:[%s77]] 64
      %s79 = scalar_lea.smem [#allocation12], 8
      %80 = sst [smem:[%s79]] 4
      %82 = dma.general %s3, 1152, %s61, [#allocation4], [#allocation11], [#allocation12], %s59, 0
    $region25: #{tpu_custom_call.1} parent=1 // pred_fallthru
      _
    %v83 = vld [vmem:[#allocation9] sm:$0x3]
    %v84 = vld [vmem:[#allocation9 + $0x2] sm:$0x3]
    %v85 = vunpack.c.l.u8.bf16 %v83
    %v86 = vunpack.c.l.u8.bf16 %v84
    %v87 = vld [vmem:[#allocation2] sm:$0xff]
    %v88 = vld [vmem:[%s2] sm:$0xf]
    %v91 = vunpack.c.l.b16 %v85
    %v92 = vunpack.c.l.b16 %v86
    %v93 = vpack.c.b16 %v92, %v91
    %vm95 = vcmask 130048
    %v97 = vsel %vm95, %v88, 0
    %99 = vmatprep.subr.bf16.mxu0 0
    %100 = vmatpush1.bf16.msra.mxu0 %v93
    %101 = vmatprep.subr.bf16.mxu0 0
    %102 = vmatpush1.bf16.msra.mxu0 0
    %103 = vmatprep.subr.bf16.mxu0 0
    %104 = vmatpush1.bf16.msra.mxu0 0
    %105 = vmatprep.subr.bf16.mxu0 0
    %106 = vmatpush1.bf16.msra.mxu0 0
    %107 = vmatprep.subr.bf16.mxu0 0
    %108 = vmatpush1.bf16.msra.mxu0 0
    %109 = vmatprep.subr.bf16.mxu0 0
    %110 = vmatpush1.bf16.msra.mxu0 0
    %111 = vmatprep.subr.bf16.mxu0 0
    %112 = vmatpush1.bf16.msra.mxu0 0
    %113 = vmatprep.subr.bf16.mxu0 0
    %114 = vmatpush1.bf16.msra.mxu0 0
    %115 = vmatprep.subr.bf16.mxu0 0
    %116 = vmatpush1.bf16.msra.mxu0 0
    %117 = vmatprep.subr.bf16.mxu0 0
    %118 = vmatpush1.bf16.msra.mxu0 0
    %119 = vmatprep.subr.bf16.mxu0 0
    %120 = vmatpush1.bf16.msra.mxu0 0
    %121 = vmatprep.subr.bf16.mxu0 0
    %122 = vmatpush1.bf16.msra.mxu0 0
    %123 = vmatprep.subr.bf16.mxu0 0
    %124 = vmatpush1.bf16.msra.mxu0 0
    %125 = vmatprep.subr.bf16.mxu0 0
    %126 = vmatpush1.bf16.msra.mxu0 0
    %127 = vmatprep.subr.bf16.mxu0 0
    %128 = vmatpush1.bf16.msra.mxu0 0
    %129 = vmatprep.subr.bf16.mxu0 0
    %130 = vmatpush1.bf16.msra.mxu0 0
    %131 = vmatprep.mubr.bf16.mxu0 0
    %132 = vmatmul.mubr.bf16.gmra.mrb[0].mxu0 %v97
    %v133 = vpop.f32.mrb[0].mxu0
    %v134 = vadd.f32 0.0, %v133
    %v135 = vpop.f32.mrb[0].mxu0
    %v136 = vpop.f32.mrb[0].mxu0
    %v137 = vpop.f32.mrb[0].mxu0
    %138 = vdwg.mxu0
    %v139 = vadd.f32 %v87, %v134
    %vm140 = vcmask 392192
    %141 = vst.msk [vmem:[#allocation2] sm:$0xff] %vm140, %v139
    // Predicated region
    $region26: #{tpu_custom_call.1} parent=1 // pred_check
      %p142 = pneg %p42
    $region27: #{tpu_custom_call.1} parent=1 // pred_check_branch
      %144 = sbr.rel (%p142) target = $region29
    $region28: #{tpu_custom_call.1} parent=1 // pred_region
      %s145 = smul.u32 4, 6
      %s146 = smul.u32 %s145, 3
      %s147 = sshll.u32 %s146, 4
      %148 = dma.done [#allocation4], %s147
      %v149 = vld [vmem:[#allocation2] sm:$0xff]
      %v150 = vpack.c.bf16 %v149, %v149
      %v151 = vld [vmem:[#allocation3] sm:$0xff]
      %v152 = vld [vmem:[#allocation3 + $0x8] sm:$0xff]
      %v153 = vld [vmem:[#allocation3 + $0x10] sm:$0xff]
      %v154 = vld [vmem:[#allocation3 + $0x18] sm:$0xff]
      %v155 = vld [vmem:[#allocation3 + $0x20] sm:$0xff]
      %v156 = vld [vmem:[#allocation3 + $0x28] sm:$0xff]
      %v157 = vld [vmem:[#allocation3 + $0x30] sm:$0xff]
      %v158 = vld [vmem:[#allocation3 + $0x38] sm:$0xff]
      %v159 = vld [vmem:[#allocation3 + $0x40] sm:$0xff]
      %v161 = vsel %vm140, %v150, 0
      %163 = vmatprep.subr.bf16.mxu0 %v152
      %164 = vmatpush1.bf16.msra.mxu0 %v151
      %165 = vmatprep.subr.bf16.mxu0 %v155
      %166 = vmatpush1.bf16.msra.mxu0 %v154
      %167 = vmatprep.subr.bf16.mxu0 %v158
      %168 = vmatpush1.bf16.msra.mxu0 %v157
      %169 = vmatprep.subr.bf16.mxu0 0
      %170 = vmatpush1.bf16.msra.mxu0 0
      %171 = vmatprep.subr.bf16.mxu0 0
      %172 = vmatpush1.bf16.msra.mxu0 0
      %173 = vmatprep.subr.bf16.mxu0 0
      %174 = vmatpush1.bf16.msra.mxu0 0
      %175 = vmatprep.subr.bf16.mxu0 0
      %176 = vmatpush1.bf16.msra.mxu0 0
      %177 = vmatprep.subr.bf16.mxu0 0
      %178 = vmatpush1.bf16.msra.mxu0 0
      %179 = vmatprep.subr.bf16.mxu0 0
      %180 = vmatpush1.bf16.msra.mxu0 0
      %181 = vmatprep.subr.bf16.mxu0 0
      %182 = vmatpush1.bf16.msra.mxu0 0
      %183 = vmatprep.subr.bf16.mxu0 0
      %184 = vmatpush1.bf16.msra.mxu0 0
      %185 = vmatprep.subr.bf16.mxu0 0
      %186 = vmatpush1.bf16.msra.mxu0 0
      %187 = vmatprep.subr.bf16.mxu0 0
      %188 = vmatpush1.bf16.msra.mxu0 0
      %189 = vmatprep.subr.bf16.mxu0 0
      %190 = vmatpush1.bf16.msra.mxu0 0
      %191 = vmatprep.subr.bf16.mxu0 0
      %192 = vmatpush1.bf16.msra.mxu0 0
      %193 = vmatprep.subr.bf16.mxu0 0
      %194 = vmatpush1.bf16.msra.mxu0 0
      %195 = vmatprep.mubr.bf16.mxu0 0
      %196 = vmatmul.mubr.bf16.gmra.mrb[0].mxu0 %v161
      %v197 = vpop.f32.mrb[0].mxu0
      %v198 = vadd.f32 0.0, %v197
      %v199 = vpop.f32.mrb[0].mxu0
      %v200 = vadd.f32 0.0, %v199
      %v201 = vpop.f32.mrb[0].mxu0
      %v202 = vpop.f32.mrb[0].mxu0
      %203 = vdwg.mxu0
      %204 = vmatprep.subr.bf16.mxu0 0
      %205 = vmatpush1.bf16.msra.mxu0 %v153
      %206 = vmatprep.subr.bf16.mxu0 0
      %207 = vmatpush1.bf16.msra.mxu0 %v156
      %208 = vmatprep.subr.bf16.mxu0 0
      %209 = vmatpush1.bf16.msra.mxu0 %v159
      %210 = vmatprep.subr.bf16.mxu0 0
      %211 = vmatpush1.bf16.msra.mxu0 0
      %212 = vmatprep.subr.bf16.mxu0 0
      %213 = vmatpush1.bf16.msra.mxu0 0
      %214 = vmatprep.subr.bf16.mxu0 0
      %215 = vmatpush1.bf16.msra.mxu0 0
      %216 = vmatprep.subr.bf16.mxu0 0
      %217 = vmatpush1.bf16.msra.mxu0 0
      %218 = vmatprep.subr.bf16.mxu0 0
      %219 = vmatpush1.bf16.msra.mxu0 0
      %220 = vmatprep.subr.bf16.mxu0 0
      %221 = vmatpush1.bf16.msra.mxu0 0
      %222 = vmatprep.subr.bf16.mxu0 0
      %223 = vmatpush1.bf16.msra.mxu0 0
      %224 = vmatprep.subr.bf16.mxu0 0
      %225 = vmatpush1.bf16.msra.mxu0 0
      %226 = vmatprep.subr.bf16.mxu0 0
      %227 = vmatpush1.bf16.msra.mxu0 0
      %228 = vmatprep.subr.bf16.mxu0 0
      %229 = vmatpush1.bf16.msra.mxu0 0
      %230 = vmatprep.subr.bf16.mxu0 0
      %231 = vmatpush1.bf16.msra.mxu0 0
      %232 = vmatprep.subr.bf16.mxu0 0
      %233 = vmatpush1.bf16.msra.mxu0 0
      %234 = vmatprep.subr.bf16.mxu0 0
      %235 = vmatpush1.bf16.msra.mxu0 0
      %236 = vmatprep.mubr.bf16.mxu0 0
      %237 = vmatmul.mubr.bf16.gmra.mrb[0].mxu0 %v161
      %v238 = vpop.f32.mrb[0].mxu0
      %v239 = vadd.f32 0.0, %v238
      %v240 = vpop.f32.mrb[0].mxu0
      %v241 = vpop.f32.mrb[0].mxu0
      %v242 = vpop.f32.mrb[0].mxu0
      %243 = vdwg.mxu0
      %s244 = sld [smem:[#allocation5]]
      %v245 = vstv %s244
      %v246 = vadd.f32 %v198, %v245
      %247 = vst [vmem:[#allocation10] sm:$0xff] %v246
      %s248 = sld [smem:[#allocation5 + $0x1]]
      %v249 = vstv %s248
      %v250 = vadd.f32 %v200, %v249
      %s251 = scalar_lea.vmem [#allocation10], 8
      %252 = vst [vmem:[%s251] sm:$0xff] %v250
      %s253 = sld [smem:[#allocation5 + $0x2]]
      %v254 = vstv %s253
      %v255 = vadd.f32 %v239, %v254
      %s256 = scalar_lea.vmem [#allocation10], 16
      %257 = vst [vmem:[%s256] sm:$0xff] %v255
    $region29: #{tpu_custom_call.1} parent=1 // pred_fallthru
      _
    // Predicated region
    $region30: #{tpu_custom_call.1} parent=1 // pred_check
      _
    $region31: #{tpu_custom_call.1} parent=1 // pred_check_branch
      %259 = sbr.rel (0) target = $region33
    $region32: #{tpu_custom_call.1} parent=1 // pred_region
      %s261 = ssub.s32 384, 384
      %262 = vsyncadd [#allocation7], %s261
      %s263 = sshll.u32 [#allocation10], 4
      %s264 = int_to_ptr.vmem [resolvable:$true] %s263
      %269 = dma.vmem_to_hbm [thread:$0]  %s264, 384, %s4, [#allocation7], 128, 128, 8
    $region33: #{tpu_custom_call.1} parent=1 // pred_fallthru
      _
    // Predicated region
    $region34: #{tpu_custom_call.1} parent=1 // pred_check
      _
    $region35: #{tpu_custom_call.1} parent=1 // pred_check_branch
      %271 = sbr.rel (0) target = $region37
    $region36: #{tpu_custom_call.1} parent=1 // pred_region
      %272 = dma.done [#allocation7], 384
    $region37: #{tpu_custom_call.1} parent=1 // pred_fallthru
      _
    %273 = vsyncpa [#allocation6], 1
    %274 = vsyncpa [#allocation7], 1
    %275 = vsyncpa [#allocation8], 1
  %276 = vsyncmov [#allocation4]
  %s277 = vpop.sfrf %276
  %p278 = scmp.eq.s32.totalorder %s277, 0
  %p279 = pneg %p278
  %281 = shalt.err (%p279)

</llo_original>
